<compile_context>
chip_gen: v6e
topology: v6e:2x2x1
jax: 0.10.0
libtpu: 0.0.40
codegen_flags: <defaults>
</compile_context>

<pallas_src>
import math
from functools import partial

import jax
import jax.numpy as jnp
from jax.experimental import pallas as pl
from jax.experimental.pallas import tpu as pltpu

_LANE = 128  # lane width / MXU-friendly padding granularity
_SUBLANE = 8


def _round_up(v, m):
    return ((v + m - 1) // m) * m


def _mlp_kernel(x_ref, w1_ref, b1_ref, w2_ref, b2_ref, o_ref, *, use_bf16):
    x = x_ref[...]
    w1 = w1_ref[...]
    w2 = w2_ref[...]
    if use_bf16:
        # bf16 MXU operands, f32 accumulation (v6e/v7x fast path).
        x = x.astype(jnp.bfloat16)
        w1 = w1.astype(jnp.bfloat16)

    # Hidden layer: Linear -> ReLU (MXU matmul, f32 accumulation; bias/ReLU in f32).
    h = jnp.dot(x, w1, preferred_element_type=jnp.float32)
    h = jnp.maximum(h + b1_ref[...], 0.0)
    # Dropout(p=0.2) is identity in eval/inference mode.

    if use_bf16:
        h = h.astype(jnp.bfloat16)
        w2 = w2.astype(jnp.bfloat16)

    # Output layer: Linear (lane-dense padded output, f32 accumulation).
    out = jnp.dot(h, w2, preferred_element_type=jnp.float32)
    o_ref[...] = (out + b2_ref[...]).astype(o_ref.dtype)


def mlp_regressor_forward(x, w1, b1, w2, b2, *, block_batch=512, use_bf16=False):
    """Fused 2-layer MLP forward.

    x : [B, F] float32
    w1: [F, H], b1: [1, H]     (hidden Linear, stored as [in, out])
    w2: [H, O], b2: [1, O]     (output Linear, stored as [in, out])
    returns [B, O] float32
    """
    B, F = x.shape
    H = w1.shape[1]
    O = w2.shape[1]

    # --- zero-pad H and O to lane-dense widths (numerically exact in f32) ---
    H_pad = _round_up(H, _LANE)
    O_pad = _round_up(O, _LANE)
    w1p = jnp.pad(w1, ((0, 0), (0, H_pad - H)))
    b1p = jnp.pad(b1, ((0, 0), (0, H_pad - H)))
    w2p = jnp.pad(w2, ((0, H_pad - H), (0, O_pad - O)))
    b2p = jnp.pad(b2, ((0, 0), (0, O_pad - O)))

    # --- batch tile: bounded so h=[TB, H_pad] f32 stays in-register/VMEM ---
    TB = min(block_batch, _round_up(B, _SUBLANE))
    TB = _round_up(TB, _SUBLANE)
    B_pad = _round_up(B, TB)
    xp = jnp.pad(x, ((0, B_pad - B), (0, 0)))

    grid = (B_pad // TB,)

    kernel = partial(_mlp_kernel, use_bf16=use_bf16)
    out = pl.pallas_call(
        kernel,
        out_shape=jax.ShapeDtypeStruct((B_pad, O_pad), x.dtype),
        grid_spec=pl.GridSpec(
            grid=grid,
            in_specs=[
                pl.BlockSpec((TB, F), lambda i: (i, 0)),        # x: new tile per step
                pl.BlockSpec((F, H_pad), lambda i: (0, 0)),     # weights: VMEM-resident
                pl.BlockSpec((1, H_pad), lambda i: (0, 0)),
                pl.BlockSpec((H_pad, O_pad), lambda i: (0, 0)),
                pl.BlockSpec((1, O_pad), lambda i: (0, 0)),
            ],
            out_specs=pl.BlockSpec((TB, O_pad), lambda i: (i, 0)),
        ),
        compiler_params=pltpu.CompilerParams(
            # Batch tiles are independent -> parallel (2 TCs on v7x).
            dimension_semantics=("parallel",),
        ),
    )(xp, w1p, b1p, w2p, b2p)

    return out[:B, :O]


def init_linear_params(key, fan_in, fan_out, dtype=jnp.float32):
    """Deterministic PyTorch-style nn.Linear init: U(-1/sqrt(fan_in), 1/sqrt(fan_in))."""
    kw, kb = jax.random.split(key)
    bound = 1.0 / math.sqrt(fan_in)
    # Stored as [in, out] so the kernel does x @ W (== x @ W_pt.T).
    w = jax.random.uniform(kw, (fan_in, fan_out), dtype, minval=-bound, maxval=bound)
    b = jax.random.uniform(kb, (1, fan_out), dtype, minval=-bound, maxval=bound)
    return w, b


def _reference(x, w1, b1, w2, b2):
    return jnp.maximum(x @ w1 + b1, 0.0) @ w2 + b2


if __name__ == "__main__":
    # Small shapes consistent with the module's forward:
    #   n_features_in_ = 16, hidden_size = 32 (default), n_outputs_ = 4
    batch, n_features, hidden, n_outputs = 8, 16, 32, 4

    key = jax.random.PRNGKey(0)
    kx, k1, k2, kx2 = jax.random.split(key, 4)

    x = jax.random.normal(kx, (batch, n_features), jnp.float32)
    w1, b1 = init_linear_params(k1, n_features, hidden)
    w2, b2 = init_linear_params(k2, hidden, n_outputs)

    # --- f32 path (exact vs reference) ---
    out = jax.block_until_ready(mlp_regressor_forward(x, w1, b1, w2, b2))
    ref = _reference(x, w1, b1, w2, b2)
    assert out.shape == (batch, n_outputs)
    assert jnp.allclose(out, ref, atol=1e-5, rtol=1e-5)

    # --- multi-tile grid path: batch not a multiple of the tile, several tiles ---
    x_big = jax.random.normal(kx2, (200, n_features), jnp.float32)
    out_big = jax.block_until_ready(
        mlp_regressor_forward(x_big, w1, b1, w2, b2, block_batch=64))
    ref_big = _reference(x_big, w1, b1, w2, b2)
    assert out_big.shape == (200, n_outputs)
    assert jnp.allclose(out_big, ref_big, atol=1e-5, rtol=1e-5)

    # --- optional bf16-MXU path (v6e/v7x fast path; looser tolerance expected) ---
    out_bf16 = jax.block_until_ready(
        mlp_regressor_forward(x, w1, b1, w2, b2, use_bf16=True))
    assert jnp.allclose(out_bf16, ref, atol=1e-1, rtol=1e-1)

    print("KERNEL_OK")
</pallas_src>

<mosaic_0001>
module attributes {stable_mosaic.version = 11 : i64} {
  func.func @_mlp_kernel(%arg0: i32, %arg1: memref<8x16xf32, #tpu.memory_space<vmem>>, %arg2: memref<16x128xf32, #tpu.memory_space<vmem>>, %arg3: memref<1x128xf32, #tpu.memory_space<vmem>>, %arg4: memref<128x128xf32, #tpu.memory_space<vmem>>, %arg5: memref<1x128xf32, #tpu.memory_space<vmem>>, %arg6: memref<8x128xf32, #tpu.memory_space<vmem>>) attributes {dimension_semantics = [#tpu.dimension_semantics<parallel>], iteration_bounds = array<i64: 1>, scalar_prefetch = 0 : i64, scratch_operands = 0 : i64, tpu.core_type = #tpu.core_type<tc>, window_params = [{transform_indices = @transform_0, window_bounds = array<i64: 8, 16>}, {pipeline_mode = #tpu.pipeline_mode<synchronous>, transform_indices = @transform_1, window_bounds = array<i64: 16, 128>}, {pipeline_mode = #tpu.pipeline_mode<synchronous>, transform_indices = @transform_2, window_bounds = array<i64: 1, 128>}, {pipeline_mode = #tpu.pipeline_mode<synchronous>, transform_indices = @transform_3, window_bounds = array<i64: 128, 128>}, {pipeline_mode = #tpu.pipeline_mode<synchronous>, transform_indices = @transform_4, window_bounds = array<i64: 1, 128>}, {transform_indices = @transform_5, window_bounds = array<i64: 8, 128>}]} {
    %c0 = arith.constant 0 : index
    %c0_0 = arith.constant 0 : index
    %0 = vector.load %arg1[%c0, %c0_0] : memref<8x16xf32, #tpu.memory_space<vmem>>, vector<8x16xf32>
    %c0_1 = arith.constant 0 : index
    %c0_2 = arith.constant 0 : index
    %1 = vector.load %arg2[%c0_1, %c0_2] : memref<16x128xf32, #tpu.memory_space<vmem>>, vector<16x128xf32>
    %c0_3 = arith.constant 0 : index
    %c0_4 = arith.constant 0 : index
    %2 = vector.load %arg4[%c0_3, %c0_4] : memref<128x128xf32, #tpu.memory_space<vmem>>, vector<128x128xf32>
    %cst = arith.constant dense<0.000000e+00> : vector<8x128xf32>
    %3 = tpu.matmul %0, %1, %cst {dimension_numbers = #tpu.dot_dimension_numbers<[1], [0], [0], [1], [0, 0, 1, 1], [], []>} : vector<8x16xf32>, vector<16x128xf32>, vector<8x128xf32> -> vector<8x128xf32>
    %c0_5 = arith.constant 0 : index
    %c0_6 = arith.constant 0 : index
    %4 = vector.load %arg3[%c0_5, %c0_6] : memref<1x128xf32, #tpu.memory_space<vmem>>, vector<1x128xf32>
    %5 = vector.broadcast %4 : vector<1x128xf32> to vector<8x128xf32>
    %6 = arith.addf %3, %5 : vector<8x128xf32>
    %cst_7 = arith.constant 0.000000e+00 : f32
    %7 = vector.broadcast %cst_7 : f32 to vector<8x128xf32>
    %8 = arith.maximumf %6, %7 : vector<8x128xf32>
    %cst_8 = arith.constant dense<0.000000e+00> : vector<8x128xf32>
    %9 = tpu.matmul %8, %2, %cst_8 {dimension_numbers = #tpu.dot_dimension_numbers<[1], [0], [0], [1], [0, 0, 1, 1], [], []>} : vector<8x128xf32>, vector<128x128xf32>, vector<8x128xf32> -> vector<8x128xf32>
    %c0_9 = arith.constant 0 : index
    %c0_10 = arith.constant 0 : index
    %10 = vector.load %arg5[%c0_9, %c0_10] : memref<1x128xf32, #tpu.memory_space<vmem>>, vector<1x128xf32>
    %11 = vector.broadcast %10 : vector<1x128xf32> to vector<8x128xf32>
    %12 = arith.addf %9, %11 : vector<8x128xf32>
    %c0_11 = arith.constant 0 : index
    %c0_12 = arith.constant 0 : index
    %13 = vector.load %arg6[%c0_11, %c0_12] : memref<8x128xf32, #tpu.memory_space<vmem>>, vector<8x128xf32>
    tpu.vector_store %arg6[%c0_11, %c0_12], %12 {strides = array<i32>} : memref<8x128xf32, #tpu.memory_space<vmem>>, vector<8x128xf32>,
    return
  }
  func.func @transform_0(%arg0: i32) -> (i32, i32) {
    %c0_i32 = arith.constant 0 : i32
    %c0_i32_0 = arith.constant 0 : i32
    return %arg0, %c0_i32 : i32, i32
  }
  func.func @transform_1(%arg0: i32) -> (i32, i32) {
    %c0_i32 = arith.constant 0 : i32
    %c0_i32_0 = arith.constant 0 : i32
    %c0_i32_1 = arith.constant 0 : i32
    return %c0_i32, %c0_i32_0 : i32, i32
  }
  func.func @transform_2(%arg0: i32) -> (i32, i32) {
    %c0_i32 = arith.constant 0 : i32
    %c0_i32_0 = arith.constant 0 : i32
    %c0_i32_1 = arith.constant 0 : i32
    return %c0_i32, %c0_i32_0 : i32, i32
  }
  func.func @transform_3(%arg0: i32) -> (i32, i32) {
    %c0_i32 = arith.constant 0 : i32
    %c0_i32_0 = arith.constant 0 : i32
    %c0_i32_1 = arith.constant 0 : i32
    return %c0_i32, %c0_i32_0 : i32, i32
  }
  func.func @transform_4(%arg0: i32) -> (i32, i32) {
    %c0_i32 = arith.constant 0 : i32
    %c0_i32_0 = arith.constant 0 : i32
    %c0_i32_1 = arith.constant 0 : i32
    return %c0_i32, %c0_i32_0 : i32, i32
  }
  func.func @transform_5(%arg0: i32) -> (i32, i32) {
    %c0_i32 = arith.constant 0 : i32
    %c0_i32_0 = arith.constant 0 : i32
    return %arg0, %c0_i32 : i32, i32
  }
}

</mosaic_0001>

<llo_original>
// kernel: tpu_custom_call.1
$region0: #{tpu_custom_call.1}
  #allocation0 [shape = 'u32[]', space=smem, size = 0x4, offset = 0x4, fixed_abs, tag = 'smem constant byte address 0x4 - core index']
  #allocation1 [shape = 'u32[144,128]{1,0:T(1,128)}', space=vmem, size = 0x12000, scoped, tag = 'internal scratch']
  %s0 = inlined_call_operand.hbm [shape: f32[8,16], index: 0, kind: input, shape index: {}]
  %s1 = inlined_call_operand.hbm [shape: f32[16,128], index: 1, kind: input, shape index: {}]
  %s2 = inlined_call_operand.vmem [shape: f32[1,128], index: 2, kind: input, shape index: {}]
  %s3 = inlined_call_operand.hbm [shape: f32[128,128], index: 3, kind: input, shape index: {}]
  %s4 = inlined_call_operand.vmem [shape: f32[1,128], index: 4, kind: input, shape index: {}]
  %s5 = inlined_call_operand.hbm [shape: f32[8,128], index: 5, kind: output, shape index: {}]
  %s6 = sld [smem:[#allocation0]]
  $region42: #{tpu_custom_call.1} parent=0
    _
  %s8 = ssub.s32 1, %s6
  %s9 = scalar_select 0, %s8, %s6
  $region1: #{tpu_custom_call.1} parent=0
    #allocation2 [shape = 'u8[4096]{0}', space=vmem, size = 0x1000, scoped, tag = 'input window, operand 0, single buffered']
    #allocation3 [shape = 's32[1]{0}', space=sflag, size = 0x4, scoped, tag = 'scoped memory for tpu_custom_call.1']
    #allocation4 [shape = 's32[1]{0}', space=sflag, size = 0x4, scoped, tag = 'scoped memory for tpu_custom_call.1']
    #allocation5 [shape = 'u8[8192]{0}', space=vmem, size = 0x2000, scoped, tag = 'input window, operand 1, single buffered']
    #allocation6 [shape = 's32[1]{0}', space=sflag, size = 0x4, scoped, tag = 'scoped memory for tpu_custom_call.1']
    #allocation7 [shape = 'u8[65536]{0}', space=vmem, size = 0x10000, scoped, tag = 'input window, operand 3, single buffered']
    #allocation8 [shape = 'u8[4096]{0}', space=vmem, size = 0x1000, scoped, tag = 'output window, operand 0, single buffered']
    %10 = vsyncpa [#allocation3], 0
    %11 = vsyncpa [#allocation6], 0
    %12 = vsyncpa [#allocation4], 0
    // Predicated region
    $region2: #{tpu_custom_call.1} parent=1 // pred_check
      _
    $region3: #{tpu_custom_call.1} parent=1 // pred_check_branch
      %14 = sbr.rel (0) target = $region5
    $region4: #{tpu_custom_call.1} parent=1 // pred_region
      %s16 = ssub.s32 128, 128
      %17 = vsyncadd [#allocation3], %s16
      %s19 = sshll.u32 [#allocation2], 4
      %s20 = int_to_ptr.vmem [resolvable:$true] %s19
      %22 = dma.hbm_to_vmem [thread:$0]  %s0, 128, %s20, [#allocation3]
    $region5: #{tpu_custom_call.1} parent=1 // pred_fallthru
      _
    // Predicated region
    $region6: #{tpu_custom_call.1} parent=1 // pred_check
      _
    $region7: #{tpu_custom_call.1} parent=1 // pred_check_branch
      %24 = sbr.rel (0) target = $region9
    $region8: #{tpu_custom_call.1} parent=1 // pred_region
      %s26 = ssub.s32 256, 256
      %27 = vsyncadd [#allocation6], %s26
      %s28 = sshll.u32 [#allocation5], 4
      %s29 = int_to_ptr.vmem [resolvable:$true] %s28
      %34 = dma.hbm_to_vmem [thread:$0]  %s1, 256, %s29, [#allocation6], 128, 128, 8
    $region9: #{tpu_custom_call.1} parent=1 // pred_fallthru
      _
    // Predicated region
    $region10: #{tpu_custom_call.1} parent=1 // pred_check
      _
    $region11: #{tpu_custom_call.1} parent=1 // pred_check_branch
      %36 = sbr.rel (0) target = $region13
    $region12: #{tpu_custom_call.1} parent=1 // pred_region
      _
    $region13: #{tpu_custom_call.1} parent=1 // pred_fallthru
      _
    // Predicated region
    $region14: #{tpu_custom_call.1} parent=1 // pred_check
      _
    $region15: #{tpu_custom_call.1} parent=1 // pred_check_branch
      %38 = sbr.rel (0) target = $region17
    $region16: #{tpu_custom_call.1} parent=1 // pred_region
      %s40 = ssub.s32 2048, 2048
      %41 = vsyncadd [#allocation6], %s40
      %s42 = sshll.u32 [#allocation7], 4
      %s43 = int_to_ptr.vmem [resolvable:$true] %s42
      %48 = dma.hbm_to_vmem [thread:$0]  %s3, 2048, %s43, [#allocation6], 128, 128, 8
    $region17: #{tpu_custom_call.1} parent=1 // pred_fallthru
      _
    // Predicated region
    $region18: #{tpu_custom_call.1} parent=1 // pred_check
      _
    $region19: #{tpu_custom_call.1} parent=1 // pred_check_branch
      %50 = sbr.rel (0) target = $region21
    $region20: #{tpu_custom_call.1} parent=1 // pred_region
      _
    $region21: #{tpu_custom_call.1} parent=1 // pred_fallthru
      _
    // Predicated region
    $region22: #{tpu_custom_call.1} parent=1 // pred_check
      _
    $region23: #{tpu_custom_call.1} parent=1 // pred_check_branch
      %52 = sbr.rel (0) target = $region25
    $region24: #{tpu_custom_call.1} parent=1 // pred_region
      %53 = dma.done [#allocation3], 128
    $region25: #{tpu_custom_call.1} parent=1 // pred_fallthru
      _
    // Predicated region
    $region26: #{tpu_custom_call.1} parent=1 // pred_check
      _
    $region27: #{tpu_custom_call.1} parent=1 // pred_check_branch
      %55 = sbr.rel (0) target = $region29
    $region28: #{tpu_custom_call.1} parent=1 // pred_region
      %56 = dma.done [#allocation6], 256
    $region29: #{tpu_custom_call.1} parent=1 // pred_fallthru
      _
    // Predicated region
    $region30: #{tpu_custom_call.1} parent=1 // pred_check
      _
    $region31: #{tpu_custom_call.1} parent=1 // pred_check_branch
      %58 = sbr.rel (0) target = $region33
    $region32: #{tpu_custom_call.1} parent=1 // pred_region
      %59 = dma.done [#allocation6], 2048
    $region33: #{tpu_custom_call.1} parent=1 // pred_fallthru
      _
    %v60 = vld [vmem:[#allocation2] sm:$0xff]
    %v61 = vld [vmem:[#allocation5] sm:$0xff]
    %v62 = vld [vmem:[#allocation5 + $0x8] sm:$0xff]
    %v63 = vld [vmem:[#allocation7] sm:$0xff]
    %v64 = vld [vmem:[#allocation7 + $0x8] sm:$0xff]
    %v65 = vld [vmem:[#allocation7 + $0x10] sm:$0xff]
    %v66 = vld [vmem:[#allocation7 + $0x18] sm:$0xff]
    %v67 = vld [vmem:[#allocation7 + $0x20] sm:$0xff]
    %v68 = vld [vmem:[#allocation7 + $0x28] sm:$0xff]
    %v69 = vld [vmem:[#allocation7 + $0x30] sm:$0xff]
    %v70 = vld [vmem:[#allocation7 + $0x38] sm:$0xff]
    %v71 = vld [vmem:[#allocation7 + $0x40] sm:$0xff]
    %v72 = vld [vmem:[#allocation7 + $0x48] sm:$0xff]
    %v73 = vld [vmem:[#allocation7 + $0x50] sm:$0xff]
    %v74 = vld [vmem:[#allocation7 + $0x58] sm:$0xff]
    %v75 = vld [vmem:[#allocation7 + $0x60] sm:$0xff]
    %v76 = vld [vmem:[#allocation7 + $0x68] sm:$0xff]
    %v77 = vld [vmem:[#allocation7 + $0x70] sm:$0xff]
    %v78 = vld [vmem:[#allocation7 + $0x78] sm:$0xff]
    %v79 = vld [vmem:[%s2] sm:$0x1]
    %v81 = vlaneseq
    %v82 = vshrl.u32 %v81, 7
    %v83 = vsub.s32 0, %v82
    %v84 = vrot.slane %v79, %v83
    %vm86 = vcmask 130048
    %v88 = vsel %vm86, %v60, 0
    %90 = vmatprep.subr.mxu0 0.0
    %91 = vmatpush1.msra.mxu0 0.0
    %92 = vmatprep.subr.mxu0 0.0
    %93 = vmatpush1.msra.mxu0 0.0
    %94 = vmatprep.subr.mxu0 0.0
    %95 = vmatpush1.msra.mxu0 0.0
    %96 = vmatprep.subr.mxu0 0.0
    %97 = vmatpush1.msra.mxu0 0.0
    %98 = vmatprep.subr.mxu0 0.0
    %99 = vmatpush1.msra.mxu0 0.0
    %100 = vmatprep.subr.mxu0 0.0
    %101 = vmatpush1.msra.mxu0 0.0
    %102 = vmatprep.subr.mxu0 0.0
    %103 = vmatpush1.msra.mxu0 0.0
    %104 = vmatprep.subr.mxu0 0.0
    %105 = vmatpush1.msra.mxu0 0.0
    %106 = vmatprep.subr.mxu0 0.0
    %107 = vmatpush1.msra.mxu0 0.0
    %108 = vmatprep.subr.mxu0 0.0
    %109 = vmatpush1.msra.mxu0 0.0
    %110 = vmatprep.subr.mxu0 0.0
    %111 = vmatpush1.msra.mxu0 0.0
    %112 = vmatprep.subr.mxu0 0.0
    %113 = vmatpush1.msra.mxu0 0.0
    %114 = vmatprep.subr.mxu0 0.0
    %115 = vmatpush1.msra.mxu0 0.0
    %116 = vmatprep.subr.mxu0 0.0
    %117 = vmatpush1.msra.mxu0 0.0
    %118 = vmatprep.subr.mxu0 0.0
    %119 = vmatpush1.msra.mxu0 %v62
    %120 = vmatprep.subr.mxu0 0.0
    %121 = vmatpush1.msra.mxu0 %v61
    %122 = vmatprep.subr.mxu0 0.0
    %123 = vmatpush2.msra.mxu0 0.0
    %124 = vmatprep.subr.mxu0 0.0
    %125 = vmatpush2.msra.mxu0 0.0
    %126 = vmatprep.subr.mxu0 0.0
    %127 = vmatpush2.msra.mxu0 0.0
    %128 = vmatprep.subr.mxu0 0.0
    %129 = vmatpush2.msra.mxu0 0.0
    %130 = vmatprep.subr.mxu0 0.0
    %131 = vmatpush2.msra.mxu0 0.0
    %132 = vmatprep.subr.mxu0 0.0
    %133 = vmatpush2.msra.mxu0 0.0
    %134 = vmatprep.subr.mxu0 0.0
    %135 = vmatpush2.msra.mxu0 0.0
    %136 = vmatprep.subr.mxu0 0.0
    %137 = vmatpush2.msra.mxu0 0.0
    %138 = vmatprep.subr.mxu0 0.0
    %139 = vmatpush2.msra.mxu0 0.0
    %140 = vmatprep.subr.mxu0 0.0
    %141 = vmatpush2.msra.mxu0 0.0
    %142 = vmatprep.subr.mxu0 0.0
    %143 = vmatpush2.msra.mxu0 0.0
    %144 = vmatprep.subr.mxu0 0.0
    %145 = vmatpush2.msra.mxu0 0.0
    %146 = vmatprep.subr.mxu0 0.0
    %147 = vmatpush2.msra.mxu0 0.0
    %148 = vmatprep.subr.mxu0 0.0
    %149 = vmatpush2.msra.mxu0 0.0
    %150 = vmatprep.subr.mxu0 0.0
    %151 = vmatpush2.msra.mxu0 0.0
    %152 = vmatprep.subr.mxu0 0.0
    %153 = vmatpush2.msra.mxu0 0.0
    %154 = vmatprep.mubr.f32.mxu0 0.0
    %155 = vmatmul.mubr.f32.gmra.mxu0 %v88
    %v156 = vpop.f32.mrf.mxu0
    %v157 = vadd.f32 %v84, %v156
    %v158 = vpop.f32.mrf.mxu0
    %159 = vdwg.mxu0
    %v160 = vmax.f32 %v157, 0.0
    %v161 = vld [vmem:[%s4] sm:$0x1]
    %v163 = vlaneseq
    %v164 = vshrl.u32 %v163, 7
    %v165 = vsub.s32 0, %v164
    %v166 = vrot.slane %v161, %v165
    %168 = vmatprep.subr.mxu0 0.0
    %169 = vmatpush1.msra.mxu0 %v78
    %170 = vmatprep.subr.mxu0 0.0
    %171 = vmatpush1.msra.mxu0 %v77
    %172 = vmatprep.subr.mxu0 0.0
    %173 = vmatpush1.msra.mxu0 %v76
    %174 = vmatprep.subr.mxu0 0.0
    %175 = vmatpush1.msra.mxu0 %v75
    %176 = vmatprep.subr.mxu0 0.0
    %177 = vmatpush1.msra.mxu0 %v74
    %178 = vmatprep.subr.mxu0 0.0
    %179 = vmatpush1.msra.mxu0 %v73
    %180 = vmatprep.subr.mxu0 0.0
    %181 = vmatpush1.msra.mxu0 %v72
    %182 = vmatprep.subr.mxu0 0.0
    %183 = vmatpush1.msra.mxu0 %v71
    %184 = vmatprep.subr.mxu0 0.0
    %185 = vmatpush1.msra.mxu0 %v70
    %186 = vmatprep.subr.mxu0 0.0
    %187 = vmatpush1.msra.mxu0 %v69
    %188 = vmatprep.subr.mxu0 0.0
    %189 = vmatpush1.msra.mxu0 %v68
    %190 = vmatprep.subr.mxu0 0.0
    %191 = vmatpush1.msra.mxu0 %v67
    %192 = vmatprep.subr.mxu0 0.0
    %193 = vmatpush1.msra.mxu0 %v66
    %194 = vmatprep.subr.mxu0 0.0
    %195 = vmatpush1.msra.mxu0 %v65
    %196 = vmatprep.subr.mxu0 0.0
    %197 = vmatpush1.msra.mxu0 %v64
    %198 = vmatprep.subr.mxu0 0.0
    %199 = vmatpush1.msra.mxu0 %v63
    %200 = vmatprep.subr.mxu0 0.0
    %201 = vmatpush2.msra.mxu0 0.0
    %202 = vmatprep.subr.mxu0 0.0
    %203 = vmatpush2.msra.mxu0 0.0
    %204 = vmatprep.subr.mxu0 0.0
    %205 = vmatpush2.msra.mxu0 0.0
    %206 = vmatprep.subr.mxu0 0.0
    %207 = vmatpush2.msra.mxu0 0.0
    %208 = vmatprep.subr.mxu0 0.0
    %209 = vmatpush2.msra.mxu0 0.0
    %210 = vmatprep.subr.mxu0 0.0
    %211 = vmatpush2.msra.mxu0 0.0
    %212 = vmatprep.subr.mxu0 0.0
    %213 = vmatpush2.msra.mxu0 0.0
    %214 = vmatprep.subr.mxu0 0.0
    %215 = vmatpush2.msra.mxu0 0.0
    %216 = vmatprep.subr.mxu0 0.0
    %217 = vmatpush2.msra.mxu0 0.0
    %218 = vmatprep.subr.mxu0 0.0
    %219 = vmatpush2.msra.mxu0 0.0
    %220 = vmatprep.subr.mxu0 0.0
    %221 = vmatpush2.msra.mxu0 0.0
    %222 = vmatprep.subr.mxu0 0.0
    %223 = vmatpush2.msra.mxu0 0.0
    %224 = vmatprep.subr.mxu0 0.0
    %225 = vmatpush2.msra.mxu0 0.0
    %226 = vmatprep.subr.mxu0 0.0
    %227 = vmatpush2.msra.mxu0 0.0
    %228 = vmatprep.subr.mxu0 0.0
    %229 = vmatpush2.msra.mxu0 0.0
    %230 = vmatprep.subr.mxu0 0.0
    %231 = vmatpush2.msra.mxu0 0.0
    %232 = vmatprep.mubr.f32.mxu0 0.0
    %233 = vmatmul.mubr.f32.gmra.mxu0 %v160
    %v234 = vpop.f32.mrf.mxu0
    %v235 = vadd.f32 %v166, %v234
    %v236 = vpop.f32.mrf.mxu0
    %237 = vdwg.mxu0
    %238 = vst [vmem:[#allocation8] sm:$0xff] %v235
    // Predicated region
    $region34: #{tpu_custom_call.1} parent=1 // pred_check
      _
    $region35: #{tpu_custom_call.1} parent=1 // pred_check_branch
      %240 = sbr.rel (0) target = $region37
    $region36: #{tpu_custom_call.1} parent=1 // pred_region
      %s242 = ssub.s32 128, 128
      %243 = vsyncadd [#allocation4], %s242
      %s245 = sshll.u32 [#allocation8], 4
      %s246 = int_to_ptr.vmem [resolvable:$true] %s245
      %248 = dma.vmem_to_hbm [thread:$0]  %s246, 128, %s5, [#allocation4]
    $region37: #{tpu_custom_call.1} parent=1 // pred_fallthru
      _
    // Predicated region
    $region38: #{tpu_custom_call.1} parent=1 // pred_check
      _
    $region39: #{tpu_custom_call.1} parent=1 // pred_check_branch
      %250 = sbr.rel (0) target = $region41
    $region40: #{tpu_custom_call.1} parent=1 // pred_region
      %251 = dma.done [#allocation4], 128
    $region41: #{tpu_custom_call.1} parent=1 // pred_fallthru
      _
    %252 = vsyncpa [#allocation3], 1
    %253 = vsyncpa [#allocation6], 1
    %254 = vsyncpa [#allocation4], 1

</llo_original>
